<compile_context>
chip_gen: v5e
topology: v5e:2x2
jax: 0.10.0
libtpu: 0.0.40
codegen_flags: <defaults>
</compile_context>

<pallas_src>
import functools

import jax
import jax.numpy as jnp
import numpy as np
from jax import lax
from jax.experimental import pallas as pl
from jax.experimental.pallas import tpu as pltpu


def _leaky_relu(x):
    return jnp.where(x > 0, x, 0.01 * x)


# --------------------------- fused forward kernel ----------------------------
def fused_kernel(x_ref, act_ref, w_ih_ref, w_hh_ref, b_lstm_ref,
                 w1s_ref, w1a_ref, b1_ref, w2_ref, b2_ref, w3t_ref, b3_ref,
                 out_ref, *, L, B):
    H = w_hh_ref.shape[0]

    # ---- LSTM: input projection hoisted out of the recurrence ---------------
    # One (L*B, S) @ (S, 4H) matmul + bias instead of L tiny MXU pushes.
    gates_x = (jnp.dot(x_ref[...], w_ih_ref[...],
                       preferred_element_type=jnp.float32)
               + b_lstm_ref[...])                                   # (L*B, 4H)

    w_hh = w_hh_ref[...]                                            # keep resident
    h = jnp.zeros((B, H), jnp.float32)
    c = jnp.zeros((B, H), jnp.float32)

    # Fully unrolled recurrence (L small & static); each step's critical path is
    # only the (B, H) @ (H, 4H) matmul on h.
    for t in range(L):
        gates = gates_x[t * B:(t + 1) * B, :] + jnp.dot(
            h, w_hh, preferred_element_type=jnp.float32)            # (B, 4H)
        i = jax.nn.sigmoid(gates[:, 0 * H:1 * H])
        f = jax.nn.sigmoid(gates[:, 1 * H:2 * H])
        g = jnp.tanh(gates[:, 2 * H:3 * H])
        o = jax.nn.sigmoid(gates[:, 3 * H:4 * H])
        c = f * c + i * g
        h = o * jnp.tanh(c)

    # ---- MLPNetwork head (2-D-states path), fused in the same kernel --------
    # `state = states[-1].unsqueeze(0)`: only the last batch element's repr.
    state = h[B - 1:B, :]                                           # (1, H)
    # W1 split into state / action halves: no (A, H+Da) broadcast+concat slab,
    # and the identical state row is projected exactly once.
    s_part = jnp.dot(state, w1s_ref[...],
                     preferred_element_type=jnp.float32)            # (1, Dh)
    a_part = jnp.dot(act_ref[...], w1a_ref[...],
                     preferred_element_type=jnp.float32)            # (A, Dh)
    x1 = _leaky_relu(a_part + s_part + b1_ref[...])                 # (A, Dh)
    x2 = _leaky_relu(jnp.dot(x1, w2_ref[...],
                             preferred_element_type=jnp.float32)
                     + b2_ref[...])                                 # (A, Dh)
    # Final layer contracts the hidden dim of (1, Dh) with (A, Dh) -> lane-dense
    # (1, A) q-row, tanh applied in-kernel (tanh=True in this config).
    q = lax.dot_general(w3t_ref[...], x2,
                        dimension_numbers=(((1,), (1,)), ((), ())),
                        preferred_element_type=jnp.float32)         # (1, A)
    out_ref[...] = jnp.tanh(q + b3_ref[...])


def lstm_mlp_forward(states, action_features, p):
    """states: (B, L, S) f32; action_features: (A, Da) f32 -> q-values (1, A)."""
    B, L, S = states.shape
    A = action_features.shape[0]
    # Time-major + flattened so the input projection is a single matmul.
    x_flat = jnp.transpose(states, (1, 0, 2)).reshape(L * B, S)

    vspec = pl.BlockSpec(memory_space=pltpu.MemorySpace.VMEM)
    kernel = functools.partial(fused_kernel, L=L, B=B)
    return pl.pallas_call(
        kernel,
        out_shape=jax.ShapeDtypeStruct((1, A), jnp.float32),
        in_specs=[vspec] * 12,
        out_specs=vspec,
    )(x_flat, action_features,
      p["w_ih"], p["w_hh"], p["b_lstm"],
      p["w1s"], p["w1a"], p["b1"], p["w2"], p["b2"], p["w3t"], p["b3"])


# --------------------------- pure-JAX reference ------------------------------
def reference_forward(states, action_features, p):
    B, L, S = states.shape
    H = p["w_hh"].shape[0]

    def step(carry, x_t):
        h, c = carry
        gates = x_t @ p["w_ih"] + h @ p["w_hh"] + p["b_lstm"][0]
        i = jax.nn.sigmoid(gates[:, :H])
        f = jax.nn.sigmoid(gates[:, H:2 * H])
        g = jnp.tanh(gates[:, 2 * H:3 * H])
        o = jax.nn.sigmoid(gates[:, 3 * H:])
        c = f * c + i * g
        h = o * jnp.tanh(c)
        return (h, c), None

    (h, _), _ = lax.scan(step,
                         (jnp.zeros((B, H)), jnp.zeros((B, H))),
                         jnp.transpose(states, (1, 0, 2)))
    state = h[-1][None, :]
    A = action_features.shape[0]
    w1 = jnp.concatenate([p["w1s"], p["w1a"]], axis=0)
    sa = jnp.concatenate([jnp.broadcast_to(state, (A, H)), action_features], axis=1)
    lr = lambda x: jnp.where(x > 0, x, 0.01 * x)
    x = lr(sa @ w1 + p["b1"][0])
    x = lr(x @ p["w2"] + p["b2"][0])
    logits = jnp.tanh(x @ jnp.transpose(p["w3t"]) + p["b3"][0])
    return logits[:, 0][None, :]


# ------------------------------- params --------------------------------------
def init_params(key, state_dim, action_dim, hidden_dim):
    ks = jax.random.split(key, 10)
    kl = 1.0 / np.sqrt(hidden_dim)

    def uni(k, shape, bound):
        return jax.random.uniform(k, shape, jnp.float32, -bound, bound)

    din = hidden_dim + action_dim  # MLP input: state_repr (H) ++ action feats (Da)
    w1 = uni(ks[4], (din, hidden_dim), 1.0 / np.sqrt(din))
    w3 = uni(ks[8], (hidden_dim, 1), kl)
    return {
        # LSTM (stored transposed for x @ W): PyTorch weight_ih is (4H, S)
        "w_ih": uni(ks[0], (state_dim, 4 * hidden_dim), kl),
        "w_hh": uni(ks[1], (hidden_dim, 4 * hidden_dim), kl),
        "b_lstm": uni(ks[2], (1, 4 * hidden_dim), kl) + uni(ks[3], (1, 4 * hidden_dim), kl),
        # MLP head: W1 split into state/action halves, W3 stored as a row.
        "w1s": w1[:hidden_dim, :],                 # (H, Dh)
        "w1a": w1[hidden_dim:, :],                 # (Da, Dh)
        "b1": uni(ks[5], (1, hidden_dim), 1.0 / np.sqrt(din)),
        "w2": uni(ks[6], (hidden_dim, hidden_dim), kl),
        "b2": uni(ks[7], (1, hidden_dim), kl),
        "w3t": jnp.transpose(w3),                  # (1, Dh)
        "b3": uni(ks[9], (1, 1), kl),
    }


# TODO(synk): list-of-sequences input (pack_sequence / pad_packed_sequence) and
# RunningNorm training-mode buffer updates are not implemented; this covers the
# eval-mode, fixed-length (B, L, S) tensor path where RunningNorm is identity.

if __name__ == "__main__":
    B, L, S = 2, 8, 16        # batch, seq len, state_dim
    H = 32                    # hidden_dim (LSTM hidden == MLP hidden), 4H = 128
    A, Da = 4, 8              # num candidate actions, action_dim

    key = jax.random.PRNGKey(0)
    kp, kx, ka = jax.random.split(key, 3)
    params = init_params(kp, S, Da, H)
    states = jax.random.normal(kx, (B, L, S), jnp.float32)
    action_features = jax.random.normal(ka, (A, Da), jnp.float32)

    q = jax.block_until_ready(lstm_mlp_forward(states, action_features, params))
    q_ref = jax.block_until_ready(reference_forward(states, action_features, params))

    assert q.shape == (1, A), q.shape
    max_err = float(jnp.max(jnp.abs(q - q_ref)))
    assert max_err < 1e-3, f"mismatch vs reference: {max_err}"

    print("KERNEL_OK")
</pallas_src>

<mosaic_0001>
module attributes {stable_mosaic.version = 11 : i64} {
  func.func @fused_kernel(%arg0: memref<16x16xf32, #tpu.memory_space<vmem>>, %arg1: memref<4x8xf32, #tpu.memory_space<vmem>>, %arg2: memref<16x128xf32, #tpu.memory_space<vmem>>, %arg3: memref<32x128xf32, #tpu.memory_space<vmem>>, %arg4: memref<1x128xf32, #tpu.memory_space<vmem>>, %arg5: memref<32x32xf32, #tpu.memory_space<vmem>>, %arg6: memref<8x32xf32, #tpu.memory_space<vmem>>, %arg7: memref<1x32xf32, #tpu.memory_space<vmem>>, %arg8: memref<32x32xf32, #tpu.memory_space<vmem>>, %arg9: memref<1x32xf32, #tpu.memory_space<vmem>>, %arg10: memref<1x32xf32, #tpu.memory_space<vmem>>, %arg11: memref<1x1xf32, #tpu.memory_space<vmem>>, %arg12: memref<1x4xf32, #tpu.memory_space<vmem>>) attributes {dimension_semantics = [], scalar_prefetch = 0 : i64, scratch_operands = 0 : i64, tpu.core_type = #tpu.core_type<tc>} {
    %c0 = arith.constant 0 : index
    %c0_0 = arith.constant 0 : index
    %0 = vector.load %arg0[%c0, %c0_0] : memref<16x16xf32, #tpu.memory_space<vmem>>, vector<16x16xf32>
    %c0_1 = arith.constant 0 : index
    %c0_2 = arith.constant 0 : index
    %1 = vector.load %arg2[%c0_1, %c0_2] : memref<16x128xf32, #tpu.memory_space<vmem>>, vector<16x128xf32>
    %cst = arith.constant dense<0.000000e+00> : vector<16x128xf32>
    %2 = tpu.matmul %0, %1, %cst {dimension_numbers = #tpu.dot_dimension_numbers<[1], [0], [0], [1], [0, 0, 1, 1], [], []>} : vector<16x16xf32>, vector<16x128xf32>, vector<16x128xf32> -> vector<16x128xf32>
    %c0_3 = arith.constant 0 : index
    %c0_4 = arith.constant 0 : index
    %3 = vector.load %arg4[%c0_3, %c0_4] : memref<1x128xf32, #tpu.memory_space<vmem>>, vector<1x128xf32>
    %4 = vector.broadcast %3 : vector<1x128xf32> to vector<16x128xf32>
    %5 = arith.addf %2, %4 : vector<16x128xf32>
    %c0_5 = arith.constant 0 : index
    %c0_6 = arith.constant 0 : index
    %6 = vector.load %arg3[%c0_5, %c0_6] : memref<32x128xf32, #tpu.memory_space<vmem>>, vector<32x128xf32>
    %cst_7 = arith.constant 0.000000e+00 : f32
    %7 = vector.broadcast %cst_7 : f32 to vector<2x32xf32>
    %cst_8 = arith.constant 0.000000e+00 : f32
    %8 = vector.broadcast %cst_8 : f32 to vector<2x32xf32>
    %9 = vector.extract_strided_slice %5 {offsets = [0, 0], sizes = [2, 128], strides = [1, 1]} : vector<16x128xf32> to vector<2x128xf32>
    %cst_9 = arith.constant dense<0.000000e+00> : vector<2x128xf32>
    %10 = tpu.matmul %7, %6, %cst_9 {dimension_numbers = #tpu.dot_dimension_numbers<[1], [0], [0], [1], [0, 0, 1, 1], [], []>} : vector<2x32xf32>, vector<32x128xf32>, vector<2x128xf32> -> vector<2x128xf32>
    %11 = arith.addf %9, %10 : vector<2x128xf32>
    %12 = vector.extract_strided_slice %11 {offsets = [0, 0], sizes = [2, 32], strides = [1, 1]} : vector<2x128xf32> to vector<2x32xf32>
    %13 = arith.negf %12 : vector<2x32xf32>
    %14 = math.exp %13 : vector<2x32xf32>
    %cst_10 = arith.constant 1.000000e+00 : f32
    %15 = vector.broadcast %cst_10 : f32 to vector<2x32xf32>
    %16 = arith.addf %15, %14 : vector<2x32xf32>
    %17 = arith.divf %15, %16 : vector<2x32xf32>
    %18 = vector.extract_strided_slice %11 {offsets = [0, 32], sizes = [2, 32], strides = [1, 1]} : vector<2x128xf32> to vector<2x32xf32>
    %19 = arith.negf %18 : vector<2x32xf32>
    %20 = math.exp %19 : vector<2x32xf32>
    %cst_11 = arith.constant 1.000000e+00 : f32
    %21 = vector.broadcast %cst_11 : f32 to vector<2x32xf32>
    %22 = arith.addf %21, %20 : vector<2x32xf32>
    %23 = arith.divf %21, %22 : vector<2x32xf32>
    %24 = vector.extract_strided_slice %11 {offsets = [0, 64], sizes = [2, 32], strides = [1, 1]} : vector<2x128xf32> to vector<2x32xf32>
    %25 = math.tanh %24 : vector<2x32xf32>
    %26 = vector.extract_strided_slice %11 {offsets = [0, 96], sizes = [2, 32], strides = [1, 1]} : vector<2x128xf32> to vector<2x32xf32>
    %27 = arith.negf %26 : vector<2x32xf32>
    %28 = math.exp %27 : vector<2x32xf32>
    %cst_12 = arith.constant 1.000000e+00 : f32
    %29 = vector.broadcast %cst_12 : f32 to vector<2x32xf32>
    %30 = arith.addf %29, %28 : vector<2x32xf32>
    %31 = arith.divf %29, %30 : vector<2x32xf32>
    %32 = arith.mulf %23, %8 : vector<2x32xf32>
    %33 = arith.mulf %17, %25 : vector<2x32xf32>
    %34 = arith.addf %32, %33 : vector<2x32xf32>
    %35 = math.tanh %34 : vector<2x32xf32>
    %36 = arith.mulf %31, %35 : vector<2x32xf32>
    %37 = vector.extract_strided_slice %5 {offsets = [2, 0], sizes = [2, 128], strides = [1, 1]} : vector<16x128xf32> to vector<2x128xf32>
    %cst_13 = arith.constant dense<0.000000e+00> : vector<2x128xf32>
    %38 = tpu.matmul %36, %6, %cst_13 {dimension_numbers = #tpu.dot_dimension_numbers<[1], [0], [0], [1], [0, 0, 1, 1], [], []>} : vector<2x32xf32>, vector<32x128xf32>, vector<2x128xf32> -> vector<2x128xf32>
    %39 = arith.addf %37, %38 : vector<2x128xf32>
    %40 = vector.extract_strided_slice %39 {offsets = [0, 0], sizes = [2, 32], strides = [1, 1]} : vector<2x128xf32> to vector<2x32xf32>
    %41 = arith.negf %40 : vector<2x32xf32>
    %42 = math.exp %41 : vector<2x32xf32>
    %cst_14 = arith.constant 1.000000e+00 : f32
    %43 = vector.broadcast %cst_14 : f32 to vector<2x32xf32>
    %44 = arith.addf %43, %42 : vector<2x32xf32>
    %45 = arith.divf %43, %44 : vector<2x32xf32>
    %46 = vector.extract_strided_slice %39 {offsets = [0, 32], sizes = [2, 32], strides = [1, 1]} : vector<2x128xf32> to vector<2x32xf32>
    %47 = arith.negf %46 : vector<2x32xf32>
    %48 = math.exp %47 : vector<2x32xf32>
    %cst_15 = arith.constant 1.000000e+00 : f32
    %49 = vector.broadcast %cst_15 : f32 to vector<2x32xf32>
    %50 = arith.addf %49, %48 : vector<2x32xf32>
    %51 = arith.divf %49, %50 : vector<2x32xf32>
    %52 = vector.extract_strided_slice %39 {offsets = [0, 64], sizes = [2, 32], strides = [1, 1]} : vector<2x128xf32> to vector<2x32xf32>
    %53 = math.tanh %52 : vector<2x32xf32>
    %54 = vector.extract_strided_slice %39 {offsets = [0, 96], sizes = [2, 32], strides = [1, 1]} : vector<2x128xf32> to vector<2x32xf32>
    %55 = arith.negf %54 : vector<2x32xf32>
    %56 = math.exp %55 : vector<2x32xf32>
    %cst_16 = arith.constant 1.000000e+00 : f32
    %57 = vector.broadcast %cst_16 : f32 to vector<2x32xf32>
    %58 = arith.addf %57, %56 : vector<2x32xf32>
    %59 = arith.divf %57, %58 : vector<2x32xf32>
    %60 = arith.mulf %51, %34 : vector<2x32xf32>
    %61 = arith.mulf %45, %53 : vector<2x32xf32>
    %62 = arith.addf %60, %61 : vector<2x32xf32>
    %63 = math.tanh %62 : vector<2x32xf32>
    %64 = arith.mulf %59, %63 : vector<2x32xf32>
    %65 = vector.extract_strided_slice %5 {offsets = [4, 0], sizes = [2, 128], strides = [1, 1]} : vector<16x128xf32> to vector<2x128xf32>
    %cst_17 = arith.constant dense<0.000000e+00> : vector<2x128xf32>
    %66 = tpu.matmul %64, %6, %cst_17 {dimension_numbers = #tpu.dot_dimension_numbers<[1], [0], [0], [1], [0, 0, 1, 1], [], []>} : vector<2x32xf32>, vector<32x128xf32>, vector<2x128xf32> -> vector<2x128xf32>
    %67 = arith.addf %65, %66 : vector<2x128xf32>
    %68 = vector.extract_strided_slice %67 {offsets = [0, 0], sizes = [2, 32], strides = [1, 1]} : vector<2x128xf32> to vector<2x32xf32>
    %69 = arith.negf %68 : vector<2x32xf32>
    %70 = math.exp %69 : vector<2x32xf32>
    %cst_18 = arith.constant 1.000000e+00 : f32
    %71 = vector.broadcast %cst_18 : f32 to vector<2x32xf32>
    %72 = arith.addf %71, %70 : vector<2x32xf32>
    %73 = arith.divf %71, %72 : vector<2x32xf32>
    %74 = vector.extract_strided_slice %67 {offsets = [0, 32], sizes = [2, 32], strides = [1, 1]} : vector<2x128xf32> to vector<2x32xf32>
    %75 = arith.negf %74 : vector<2x32xf32>
    %76 = math.exp %75 : vector<2x32xf32>
    %cst_19 = arith.constant 1.000000e+00 : f32
    %77 = vector.broadcast %cst_19 : f32 to vector<2x32xf32>
    %78 = arith.addf %77, %76 : vector<2x32xf32>
    %79 = arith.divf %77, %78 : vector<2x32xf32>
    %80 = vector.extract_strided_slice %67 {offsets = [0, 64], sizes = [2, 32], strides = [1, 1]} : vector<2x128xf32> to vector<2x32xf32>
    %81 = math.tanh %80 : vector<2x32xf32>
    %82 = vector.extract_strided_slice %67 {offsets = [0, 96], sizes = [2, 32], strides = [1, 1]} : vector<2x128xf32> to vector<2x32xf32>
    %83 = arith.negf %82 : vector<2x32xf32>
    %84 = math.exp %83 : vector<2x32xf32>
    %cst_20 = arith.constant 1.000000e+00 : f32
    %85 = vector.broadcast %cst_20 : f32 to vector<2x32xf32>
    %86 = arith.addf %85, %84 : vector<2x32xf32>
    %87 = arith.divf %85, %86 : vector<2x32xf32>
    %88 = arith.mulf %79, %62 : vector<2x32xf32>
    %89 = arith.mulf %73, %81 : vector<2x32xf32>
    %90 = arith.addf %88, %89 : vector<2x32xf32>
    %91 = math.tanh %90 : vector<2x32xf32>
    %92 = arith.mulf %87, %91 : vector<2x32xf32>
    %93 = vector.extract_strided_slice %5 {offsets = [6, 0], sizes = [2, 128], strides = [1, 1]} : vector<16x128xf32> to vector<2x128xf32>
    %cst_21 = arith.constant dense<0.000000e+00> : vector<2x128xf32>
    %94 = tpu.matmul %92, %6, %cst_21 {dimension_numbers = #tpu.dot_dimension_numbers<[1], [0], [0], [1], [0, 0, 1, 1], [], []>} : vector<2x32xf32>, vector<32x128xf32>, vector<2x128xf32> -> vector<2x128xf32>
    %95 = arith.addf %93, %94 : vector<2x128xf32>
    %96 = vector.extract_strided_slice %95 {offsets = [0, 0], sizes = [2, 32], strides = [1, 1]} : vector<2x128xf32> to vector<2x32xf32>
    %97 = arith.negf %96 : vector<2x32xf32>
    %98 = math.exp %97 : vector<2x32xf32>
    %cst_22 = arith.constant 1.000000e+00 : f32
    %99 = vector.broadcast %cst_22 : f32 to vector<2x32xf32>
    %100 = arith.addf %99, %98 : vector<2x32xf32>
    %101 = arith.divf %99, %100 : vector<2x32xf32>
    %102 = vector.extract_strided_slice %95 {offsets = [0, 32], sizes = [2, 32], strides = [1, 1]} : vector<2x128xf32> to vector<2x32xf32>
    %103 = arith.negf %102 : vector<2x32xf32>
    %104 = math.exp %103 : vector<2x32xf32>
    %cst_23 = arith.constant 1.000000e+00 : f32
    %105 = vector.broadcast %cst_23 : f32 to vector<2x32xf32>
    %106 = arith.addf %105, %104 : vector<2x32xf32>
    %107 = arith.divf %105, %106 : vector<2x32xf32>
    %108 = vector.extract_strided_slice %95 {offsets = [0, 64], sizes = [2, 32], strides = [1, 1]} : vector<2x128xf32> to vector<2x32xf32>
    %109 = math.tanh %108 : vector<2x32xf32>
    %110 = vector.extract_strided_slice %95 {offsets = [0, 96], sizes = [2, 32], strides = [1, 1]} : vector<2x128xf32> to vector<2x32xf32>
    %111 = arith.negf %110 : vector<2x32xf32>
    %112 = math.exp %111 : vector<2x32xf32>
    %cst_24 = arith.constant 1.000000e+00 : f32
    %113 = vector.broadcast %cst_24 : f32 to vector<2x32xf32>
    %114 = arith.addf %113, %112 : vector<2x32xf32>
    %115 = arith.divf %113, %114 : vector<2x32xf32>
    %116 = arith.mulf %107, %90 : vector<2x32xf32>
    %117 = arith.mulf %101, %109 : vector<2x32xf32>
    %118 = arith.addf %116, %117 : vector<2x32xf32>
    %119 = math.tanh %118 : vector<2x32xf32>
    %120 = arith.mulf %115, %119 : vector<2x32xf32>
    %121 = vector.extract_strided_slice %5 {offsets = [8, 0], sizes = [2, 128], strides = [1, 1]} : vector<16x128xf32> to vector<2x128xf32>
    %cst_25 = arith.constant dense<0.000000e+00> : vector<2x128xf32>
    %122 = tpu.matmul %120, %6, %cst_25 {dimension_numbers = #tpu.dot_dimension_numbers<[1], [0], [0], [1], [0, 0, 1, 1], [], []>} : vector<2x32xf32>, vector<32x128xf32>, vector<2x128xf32> -> vector<2x128xf32>
    %123 = arith.addf %121, %122 : vector<2x128xf32>
    %124 = vector.extract_strided_slice %123 {offsets = [0, 0], sizes = [2, 32], strides = [1, 1]} : vector<2x128xf32> to vector<2x32xf32>
    %125 = arith.negf %124 : vector<2x32xf32>
    %126 = math.exp %125 : vector<2x32xf32>
    %cst_26 = arith.constant 1.000000e+00 : f32
    %127 = vector.broadcast %cst_26 : f32 to vector<2x32xf32>
    %128 = arith.addf %127, %126 : vector<2x32xf32>
    %129 = arith.divf %127, %128 : vector<2x32xf32>
    %130 = vector.extract_strided_slice %123 {offsets = [0, 32], sizes = [2, 32], strides = [1, 1]} : vector<2x128xf32> to vector<2x32xf32>
    %131 = arith.negf %130 : vector<2x32xf32>
    %132 = math.exp %131 : vector<2x32xf32>
    %cst_27 = arith.constant 1.000000e+00 : f32
    %133 = vector.broadcast %cst_27 : f32 to vector<2x32xf32>
    %134 = arith.addf %133, %132 : vector<2x32xf32>
    %135 = arith.divf %133, %134 : vector<2x32xf32>
    %136 = vector.extract_strided_slice %123 {offsets = [0, 64], sizes = [2, 32], strides = [1, 1]} : vector<2x128xf32> to vector<2x32xf32>
    %137 = math.tanh %136 : vector<2x32xf32>
    %138 = vector.extract_strided_slice %123 {offsets = [0, 96], sizes = [2, 32], strides = [1, 1]} : vector<2x128xf32> to vector<2x32xf32>
    %139 = arith.negf %138 : vector<2x32xf32>
    %140 = math.exp %139 : vector<2x32xf32>
    %cst_28 = arith.constant 1.000000e+00 : f32
    %141 = vector.broadcast %cst_28 : f32 to vector<2x32xf32>
    %142 = arith.addf %141, %140 : vector<2x32xf32>
    %143 = arith.divf %141, %142 : vector<2x32xf32>
    %144 = arith.mulf %135, %118 : vector<2x32xf32>
    %145 = arith.mulf %129, %137 : vector<2x32xf32>
    %146 = arith.addf %144, %145 : vector<2x32xf32>
    %147 = math.tanh %146 : vector<2x32xf32>
    %148 = arith.mulf %143, %147 : vector<2x32xf32>
    %149 = vector.extract_strided_slice %5 {offsets = [10, 0], sizes = [2, 128], strides = [1, 1]} : vector<16x128xf32> to vector<2x128xf32>
    %cst_29 = arith.constant dense<0.000000e+00> : vector<2x128xf32>
    %150 = tpu.matmul %148, %6, %cst_29 {dimension_numbers = #tpu.dot_dimension_numbers<[1], [0], [0], [1], [0, 0, 1, 1], [], []>} : vector<2x32xf32>, vector<32x128xf32>, vector<2x128xf32> -> vector<2x128xf32>
    %151 = arith.addf %149, %150 : vector<2x128xf32>
    %152 = vector.extract_strided_slice %151 {offsets = [0, 0], sizes = [2, 32], strides = [1, 1]} : vector<2x128xf32> to vector<2x32xf32>
    %153 = arith.negf %152 : vector<2x32xf32>
    %154 = math.exp %153 : vector<2x32xf32>
    %cst_30 = arith.constant 1.000000e+00 : f32
    %155 = vector.broadcast %cst_30 : f32 to vector<2x32xf32>
    %156 = arith.addf %155, %154 : vector<2x32xf32>
    %157 = arith.divf %155, %156 : vector<2x32xf32>
    %158 = vector.extract_strided_slice %151 {offsets = [0, 32], sizes = [2, 32], strides = [1, 1]} : vector<2x128xf32> to vector<2x32xf32>
    %159 = arith.negf %158 : vector<2x32xf32>
    %160 = math.exp %159 : vector<2x32xf32>
    %cst_31 = arith.constant 1.000000e+00 : f32
    %161 = vector.broadcast %cst_31 : f32 to vector<2x32xf32>
    %162 = arith.addf %161, %160 : vector<2x32xf32>
    %163 = arith.divf %161, %162 : vector<2x32xf32>
    %164 = vector.extract_strided_slice %151 {offsets = [0, 64], sizes = [2, 32], strides = [1, 1]} : vector<2x128xf32> to vector<2x32xf32>
    %165 = math.tanh %164 : vector<2x32xf32>
    %166 = vector.extract_strided_slice %151 {offsets = [0, 96], sizes = [2, 32], strides = [1, 1]} : vector<2x128xf32> to vector<2x32xf32>
    %167 = arith.negf %166 : vector<2x32xf32>
    %168 = math.exp %167 : vector<2x32xf32>
    %cst_32 = arith.constant 1.000000e+00 : f32
    %169 = vector.broadcast %cst_32 : f32 to vector<2x32xf32>
    %170 = arith.addf %169, %168 : vector<2x32xf32>
    %171 = arith.divf %169, %170 : vector<2x32xf32>
    %172 = arith.mulf %163, %146 : vector<2x32xf32>
    %173 = arith.mulf %157, %165 : vector<2x32xf32>
    %174 = arith.addf %172, %173 : vector<2x32xf32>
    %175 = math.tanh %174 : vector<2x32xf32>
    %176 = arith.mulf %171, %175 : vector<2x32xf32>
    %177 = vector.extract_strided_slice %5 {offsets = [12, 0], sizes = [2, 128], strides = [1, 1]} : vector<16x128xf32> to vector<2x128xf32>
    %cst_33 = arith.constant dense<0.000000e+00> : vector<2x128xf32>
    %178 = tpu.matmul %176, %6, %cst_33 {dimension_numbers = #tpu.dot_dimension_numbers<[1], [0], [0], [1], [0, 0, 1, 1], [], []>} : vector<2x32xf32>, vector<32x128xf32>, vector<2x128xf32> -> vector<2x128xf32>
    %179 = arith.addf %177, %178 : vector<2x128xf32>
    %180 = vector.extract_strided_slice %179 {offsets = [0, 0], sizes = [2, 32], strides = [1, 1]} : vector<2x128xf32> to vector<2x32xf32>
    %181 = arith.negf %180 : vector<2x32xf32>
    %182 = math.exp %181 : vector<2x32xf32>
    %cst_34 = arith.constant 1.000000e+00 : f32
    %183 = vector.broadcast %cst_34 : f32 to vector<2x32xf32>
    %184 = arith.addf %183, %182 : vector<2x32xf32>
    %185 = arith.divf %183, %184 : vector<2x32xf32>
    %186 = vector.extract_strided_slice %179 {offsets = [0, 32], sizes = [2, 32], strides = [1, 1]} : vector<2x128xf32> to vector<2x32xf32>
    %187 = arith.negf %186 : vector<2x32xf32>
    %188 = math.exp %187 : vector<2x32xf32>
    %cst_35 = arith.constant 1.000000e+00 : f32
    %189 = vector.broadcast %cst_35 : f32 to vector<2x32xf32>
    %190 = arith.addf %189, %188 : vector<2x32xf32>
    %191 = arith.divf %189, %190 : vector<2x32xf32>
    %192 = vector.extract_strided_slice %179 {offsets = [0, 64], sizes = [2, 32], strides = [1, 1]} : vector<2x128xf32> to vector<2x32xf32>
    %193 = math.tanh %192 : vector<2x32xf32>
    %194 = vector.extract_strided_slice %179 {offsets = [0, 96], sizes = [2, 32], strides = [1, 1]} : vector<2x128xf32> to vector<2x32xf32>
    %195 = arith.negf %194 : vector<2x32xf32>
    %196 = math.exp %195 : vector<2x32xf32>
    %cst_36 = arith.constant 1.000000e+00 : f32
    %197 = vector.broadcast %cst_36 : f32 to vector<2x32xf32>
    %198 = arith.addf %197, %196 : vector<2x32xf32>
    %199 = arith.divf %197, %198 : vector<2x32xf32>
    %200 = arith.mulf %191, %174 : vector<2x32xf32>
    %201 = arith.mulf %185, %193 : vector<2x32xf32>
    %202 = arith.addf %200, %201 : vector<2x32xf32>
    %203 = math.tanh %202 : vector<2x32xf32>
    %204 = arith.mulf %199, %203 : vector<2x32xf32>
    %205 = vector.extract_strided_slice %5 {offsets = [14, 0], sizes = [2, 128], strides = [1, 1]} : vector<16x128xf32> to vector<2x128xf32>
    %cst_37 = arith.constant dense<0.000000e+00> : vector<2x128xf32>
    %206 = tpu.matmul %204, %6, %cst_37 {dimension_numbers = #tpu.dot_dimension_numbers<[1], [0], [0], [1], [0, 0, 1, 1], [], []>} : vector<2x32xf32>, vector<32x128xf32>, vector<2x128xf32> -> vector<2x128xf32>
    %207 = arith.addf %205, %206 : vector<2x128xf32>
    %208 = vector.extract_strided_slice %207 {offsets = [0, 0], sizes = [2, 32], strides = [1, 1]} : vector<2x128xf32> to vector<2x32xf32>
    %209 = arith.negf %208 : vector<2x32xf32>
    %210 = math.exp %209 : vector<2x32xf32>
    %cst_38 = arith.constant 1.000000e+00 : f32
    %211 = vector.broadcast %cst_38 : f32 to vector<2x32xf32>
    %212 = arith.addf %211, %210 : vector<2x32xf32>
    %213 = arith.divf %211, %212 : vector<2x32xf32>
    %214 = vector.extract_strided_slice %207 {offsets = [0, 32], sizes = [2, 32], strides = [1, 1]} : vector<2x128xf32> to vector<2x32xf32>
    %215 = arith.negf %214 : vector<2x32xf32>
    %216 = math.exp %215 : vector<2x32xf32>
    %cst_39 = arith.constant 1.000000e+00 : f32
    %217 = vector.broadcast %cst_39 : f32 to vector<2x32xf32>
    %218 = arith.addf %217, %216 : vector<2x32xf32>
    %219 = arith.divf %217, %218 : vector<2x32xf32>
    %220 = vector.extract_strided_slice %207 {offsets = [0, 64], sizes = [2, 32], strides = [1, 1]} : vector<2x128xf32> to vector<2x32xf32>
    %221 = math.tanh %220 : vector<2x32xf32>
    %222 = vector.extract_strided_slice %207 {offsets = [0, 96], sizes = [2, 32], strides = [1, 1]} : vector<2x128xf32> to vector<2x32xf32>
    %223 = arith.negf %222 : vector<2x32xf32>
    %224 = math.exp %223 : vector<2x32xf32>
    %cst_40 = arith.constant 1.000000e+00 : f32
    %225 = vector.broadcast %cst_40 : f32 to vector<2x32xf32>
    %226 = arith.addf %225, %224 : vector<2x32xf32>
    %227 = arith.divf %225, %226 : vector<2x32xf32>
    %228 = arith.mulf %219, %202 : vector<2x32xf32>
    %229 = arith.mulf %213, %221 : vector<2x32xf32>
    %230 = arith.addf %228, %229 : vector<2x32xf32>
    %231 = math.tanh %230 : vector<2x32xf32>
    %232 = arith.mulf %227, %231 : vector<2x32xf32>
    %233 = vector.extract_strided_slice %232 {offsets = [1, 0], sizes = [1, 32], strides = [1, 1]} : vector<2x32xf32> to vector<1x32xf32>
    %c0_41 = arith.constant 0 : index
    %c0_42 = arith.constant 0 : index
    %234 = vector.load %arg5[%c0_41, %c0_42] : memref<32x32xf32, #tpu.memory_space<vmem>>, vector<32x32xf32>
    %cst_43 = arith.constant dense<0.000000e+00> : vector<1x32xf32>
    %235 = tpu.matmul %233, %234, %cst_43 {dimension_numbers = #tpu.dot_dimension_numbers<[1], [0], [0], [1], [0, 0, 1, 1], [], []>} : vector<1x32xf32>, vector<32x32xf32>, vector<1x32xf32> -> vector<1x32xf32>
    %c0_44 = arith.constant 0 : index
    %c0_45 = arith.constant 0 : index
    %236 = vector.load %arg1[%c0_44, %c0_45] : memref<4x8xf32, #tpu.memory_space<vmem>>, vector<4x8xf32>
    %c0_46 = arith.constant 0 : index
    %c0_47 = arith.constant 0 : index
    %237 = vector.load %arg6[%c0_46, %c0_47] : memref<8x32xf32, #tpu.memory_space<vmem>>, vector<8x32xf32>
    %cst_48 = arith.constant dense<0.000000e+00> : vector<4x32xf32>
    %238 = tpu.matmul %236, %237, %cst_48 {dimension_numbers = #tpu.dot_dimension_numbers<[1], [0], [0], [1], [0, 0, 1, 1], [], []>} : vector<4x8xf32>, vector<8x32xf32>, vector<4x32xf32> -> vector<4x32xf32>
    %239 = vector.broadcast %235 : vector<1x32xf32> to vector<4x32xf32>
    %240 = arith.addf %238, %239 : vector<4x32xf32>
    %c0_49 = arith.constant 0 : index
    %c0_50 = arith.constant 0 : index
    %241 = vector.load %arg7[%c0_49, %c0_50] : memref<1x32xf32, #tpu.memory_space<vmem>>, vector<1x32xf32>
    %242 = vector.broadcast %241 : vector<1x32xf32> to vector<4x32xf32>
    %243 = arith.addf %240, %242 : vector<4x32xf32>
    %cst_51 = arith.constant 0.000000e+00 : f32
    %244 = vector.broadcast %cst_51 : f32 to vector<4x32xf32>
    %245 = arith.cmpf ogt, %243, %244 : vector<4x32xf32>
    %cst_52 = arith.constant 0.00999999977 : f32
    %246 = vector.broadcast %cst_52 : f32 to vector<4x32xf32>
    %247 = arith.mulf %246, %243 : vector<4x32xf32>
    %248 = arith.select %245, %243, %247 : vector<4x32xi1>, vector<4x32xf32>
    %c0_53 = arith.constant 0 : index
    %c0_54 = arith.constant 0 : index
    %249 = vector.load %arg8[%c0_53, %c0_54] : memref<32x32xf32, #tpu.memory_space<vmem>>, vector<32x32xf32>
    %cst_55 = arith.constant dense<0.000000e+00> : vector<4x32xf32>
    %250 = tpu.matmul %248, %249, %cst_55 {dimension_numbers = #tpu.dot_dimension_numbers<[1], [0], [0], [1], [0, 0, 1, 1], [], []>} : vector<4x32xf32>, vector<32x32xf32>, vector<4x32xf32> -> vector<4x32xf32>
    %c0_56 = arith.constant 0 : index
    %c0_57 = arith.constant 0 : index
    %251 = vector.load %arg9[%c0_56, %c0_57] : memref<1x32xf32, #tpu.memory_space<vmem>>, vector<1x32xf32>
    %252 = vector.broadcast %251 : vector<1x32xf32> to vector<4x32xf32>
    %253 = arith.addf %250, %252 : vector<4x32xf32>
    %cst_58 = arith.constant 0.000000e+00 : f32
    %254 = vector.broadcast %cst_58 : f32 to vector<4x32xf32>
    %255 = arith.cmpf ogt, %253, %254 : vector<4x32xf32>
    %cst_59 = arith.constant 0.00999999977 : f32
    %256 = vector.broadcast %cst_59 : f32 to vector<4x32xf32>
    %257 = arith.mulf %256, %253 : vector<4x32xf32>
    %258 = arith.select %255, %253, %257 : vector<4x32xi1>, vector<4x32xf32>
    %c0_60 = arith.constant 0 : index
    %c0_61 = arith.constant 0 : index
    %259 = vector.load %arg10[%c0_60, %c0_61] : memref<1x32xf32, #tpu.memory_space<vmem>>, vector<1x32xf32>
    %cst_62 = arith.constant dense<0.000000e+00> : vector<1x4xf32>
    %260 = tpu.matmul %259, %258, %cst_62 {dimension_numbers = #tpu.dot_dimension_numbers<[1], [1], [0], [0], [0, 0, 1, 0], [], []>} : vector<1x32xf32>, vector<4x32xf32>, vector<1x4xf32> -> vector<1x4xf32>
    %c0_63 = arith.constant 0 : index
    %c0_64 = arith.constant 0 : index
    %261 = vector.load %arg11[%c0_63, %c0_64] : memref<1x1xf32, #tpu.memory_space<vmem>>, vector<1x1xf32>
    %262 = vector.broadcast %261 : vector<1x1xf32> to vector<1x4xf32>
    %263 = arith.addf %260, %262 : vector<1x4xf32>
    %264 = math.tanh %263 : vector<1x4xf32>
    %c0_65 = arith.constant 0 : index
    %c0_66 = arith.constant 0 : index
    %265 = vector.load %arg12[%c0_65, %c0_66] : memref<1x4xf32, #tpu.memory_space<vmem>>, vector<1x4xf32>
    tpu.vector_store %arg12[%c0_65, %c0_66], %264 {strides = array<i32>} : memref<1x4xf32, #tpu.memory_space<vmem>>, vector<1x4xf32>,
    return
  }
}

</mosaic_0001>

<llo_original>
// kernel: tpu_custom_call.1
$region0: #{tpu_custom_call.1}
  #allocation0 [shape = 'u32[]', space=smem, size = 0x4, offset = 0x4, fixed_abs, tag = 'smem constant byte address 0x4 - core index']
  #allocation1 [shape = 'u32[72,128]{1,0:T(1,128)}', space=vmem, size = 0x9000, scoped, tag = 'internal scratch']
  #allocation2 [shape = 'f32[1,1]{1,0:T(1,128)S(1)}', space=vmem, size = 0x200, scoped, tag = 'scoped memory for tpu_custom_call.1']
  %s0 = inlined_call_operand.hbm [shape: f32[16,16], index: 0, kind: input, shape index: {}]
  %s1 = inlined_call_operand.hbm [shape: f32[4,8], index: 1, kind: input, shape index: {}]
  %s2 = inlined_call_operand.hbm [shape: f32[16,128], index: 2, kind: input, shape index: {}]
  %s3 = inlined_call_operand.hbm [shape: f32[32,128], index: 3, kind: input, shape index: {}]
  %s4 = inlined_call_operand.vmem [shape: f32[1,128], index: 4, kind: input, shape index: {}]
  %s5 = inlined_call_operand.hbm [shape: f32[32,32], index: 5, kind: input, shape index: {}]
  %s6 = inlined_call_operand.hbm [shape: f32[8,32], index: 6, kind: input, shape index: {}]
  %s7 = inlined_call_operand.vmem [shape: f32[1,32], index: 7, kind: input, shape index: {}]
  %s8 = inlined_call_operand.hbm [shape: f32[32,32], index: 8, kind: input, shape index: {}]
  %s9 = inlined_call_operand.vmem [shape: f32[1,32], index: 9, kind: input, shape index: {}]
  %s10 = inlined_call_operand.vmem [shape: f32[1,32], index: 10, kind: input, shape index: {}]
  %s11 = inlined_call_operand.<no memory space> [shape: f32[1,1], index: 11, kind: input, shape index: {}]
  %s12 = inlined_call_operand.hbm [shape: f32[1,4], index: 12, kind: output, shape index: {}]
  %s13 = sld [smem:[#allocation0]]
  $region86: #{tpu_custom_call.1} parent=0
    _
  %s15 = ssub.s32 1, %s13
  %s16 = scalar_select 0, %s15, %s13
  %v17 = vstv %s11
  %18 = vst [vmem:[#allocation2] sm:$0x1] %v17
  $region1: #{tpu_custom_call.1} parent=0
    #allocation3 [shape = 'u8[8192]{0}', space=vmem, size = 0x2000, scoped, tag = 'input window, operand 0, single buffered']
    #allocation4 [shape = 's32[1]{0}', space=sflag, size = 0x4, scoped, tag = 'scoped memory for tpu_custom_call.1']
    #allocation5 [shape = 's32[1]{0}', space=sflag, size = 0x4, scoped, tag = 'scoped memory for tpu_custom_call.1']
    #allocation6 [shape = 'u8[2048]{0}', space=vmem, size = 0x800, scoped, tag = 'input window, operand 1, single buffered']
    #allocation7 [shape = 's32[1]{0}', space=sflag, size = 0x4, scoped, tag = 'scoped memory for tpu_custom_call.1']
    #allocation8 [shape = 'u8[8192]{0}', space=vmem, size = 0x2000, scoped, tag = 'input window, operand 2, single buffered']
    #allocation9 [shape = 'u8[16384]{0}', space=vmem, size = 0x4000, scoped, tag = 'input window, operand 3, single buffered']
    #allocation10 [shape = 's32[1]{0}', space=sflag, size = 0x4, scoped, tag = 'scoped memory for tpu_custom_call.1']
    #allocation11 [shape = 'u8[16384]{0}', space=vmem, size = 0x4000, scoped, tag = 'input window, operand 5, single buffered']
    #allocation12 [shape = 'u8[4096]{0}', space=vmem, size = 0x1000, scoped, tag = 'input window, operand 6, single buffered']
    #allocation13 [shape = 's32[1]{0}', space=sflag, size = 0x4, scoped, tag = 'scoped memory for tpu_custom_call.1']
    #allocation14 [shape = 'u8[16384]{0}', space=vmem, size = 0x4000, scoped, tag = 'input window, operand 8, single buffered']
    #allocation15 [shape = 'u8[512]{0}', space=vmem, size = 0x400, scoped, tag = 'output window, operand 0, single buffered']
    %19 = vsyncpa [#allocation4], 0
    %20 = vsyncpa [#allocation7], 0
    %21 = vsyncpa [#allocation10], 0
    %22 = vsyncpa [#allocation13], 0
    %23 = vsyncpa [#allocation5], 0
    // Predicated region
    $region2: #{tpu_custom_call.1} parent=1 // pred_check
      _
    $region3: #{tpu_custom_call.1} parent=1 // pred_check_branch
      %25 = sbr.rel (0) target = $region5
    $region4: #{tpu_custom_call.1} parent=1 // pred_region
      %27 = vsyncadd [#allocation4], 0
      %s28 = sshll.u32 %s0, 4
      %s29 = int_to_ptr.hbm [resolvable:$true] %s28
      %s30 = sshll.u32 [#allocation3], 4
      %s31 = int_to_ptr.vmem [resolvable:$true] %s30
      %36 = dma.hbm_to_vmem [thread:$0]  %s29, 256, %s31, [#allocation4], 128, 128, 8
    $region5: #{tpu_custom_call.1} parent=1 // pred_fallthru
      _
    // Predicated region
    $region6: #{tpu_custom_call.1} parent=1 // pred_check
      _
    $region7: #{tpu_custom_call.1} parent=1 // pred_check_branch
      %38 = sbr.rel (0) target = $region9
    $region8: #{tpu_custom_call.1} parent=1 // pred_region
      %40 = vsyncadd [#allocation7], 0
      %s42 = sshll.u32 %s1, 4
      %s43 = int_to_ptr.hbm [resolvable:$true] %s42
      %s44 = sshll.u32 [#allocation6], 4
      %s45 = int_to_ptr.vmem [resolvable:$true] %s44
      %47 = dma.hbm_to_vmem [thread:$0]  %s43, 64, %s45, [#allocation7]
    $region9: #{tpu_custom_call.1} parent=1 // pred_fallthru
      _
    // Predicated region
    $region10: #{tpu_custom_call.1} parent=1 // pred_check
      _
    $region11: #{tpu_custom_call.1} parent=1 // pred_check_branch
      %49 = sbr.rel (0) target = $region13
    $region12: #{tpu_custom_call.1} parent=1 // pred_region
      %51 = vsyncadd [#allocation7], 0
      %s52 = sshll.u32 %s2, 4
      %s53 = int_to_ptr.hbm [resolvable:$true] %s52
      %s54 = sshll.u32 [#allocation8], 4
      %s55 = int_to_ptr.vmem [resolvable:$true] %s54
      %60 = dma.hbm_to_vmem [thread:$0]  %s53, 256, %s55, [#allocation7], 128, 128, 8
    $region13: #{tpu_custom_call.1} parent=1 // pred_fallthru
      _
    // Predicated region
    $region14: #{tpu_custom_call.1} parent=1 // pred_check
      _
    $region15: #{tpu_custom_call.1} parent=1 // pred_check_branch
      %62 = sbr.rel (0) target = $region17
    $region16: #{tpu_custom_call.1} parent=1 // pred_region
      %64 = vsyncadd [#allocation10], 0
      %s65 = sshll.u32 %s3, 4
      %s66 = int_to_ptr.hbm [resolvable:$true] %s65
      %s67 = sshll.u32 [#allocation9], 4
      %s68 = int_to_ptr.vmem [resolvable:$true] %s67
      %73 = dma.hbm_to_vmem [thread:$0]  %s66, 512, %s68, [#allocation10], 128, 128, 8
    $region17: #{tpu_custom_call.1} parent=1 // pred_fallthru
      _
    // Predicated region
    $region18: #{tpu_custom_call.1} parent=1 // pred_check
      _
    $region19: #{tpu_custom_call.1} parent=1 // pred_check_branch
      %75 = sbr.rel (0) target = $region21
    $region20: #{tpu_custom_call.1} parent=1 // pred_region
      _
    $region21: #{tpu_custom_call.1} parent=1 // pred_fallthru
      _
    // Predicated region
    $region22: #{tpu_custom_call.1} parent=1 // pred_check
      _
    $region23: #{tpu_custom_call.1} parent=1 // pred_check_branch
      %77 = sbr.rel (0) target = $region25
    $region24: #{tpu_custom_call.1} parent=1 // pred_region
      %79 = vsyncadd [#allocation10], 0
      %s80 = sshll.u32 %s5, 4
      %s81 = int_to_ptr.hbm [resolvable:$true] %s80
      %s82 = sshll.u32 [#allocation11], 4
      %s83 = int_to_ptr.vmem [resolvable:$true] %s82
      %88 = dma.hbm_to_vmem [thread:$0]  %s81, 512, %s83, [#allocation10], 128, 128, 8
    $region25: #{tpu_custom_call.1} parent=1 // pred_fallthru
      _
    // Predicated region
    $region26: #{tpu_custom_call.1} parent=1 // pred_check
      _
    $region27: #{tpu_custom_call.1} parent=1 // pred_check_branch
      %90 = sbr.rel (0) target = $region29
    $region28: #{tpu_custom_call.1} parent=1 // pred_region
      %92 = vsyncadd [#allocation13], 0
      %s94 = sshll.u32 %s6, 4
      %s95 = int_to_ptr.hbm [resolvable:$true] %s94
      %s96 = sshll.u32 [#allocation12], 4
      %s97 = int_to_ptr.vmem [resolvable:$true] %s96
      %99 = dma.hbm_to_vmem [thread:$0]  %s95, 128, %s97, [#allocation13]
    $region29: #{tpu_custom_call.1} parent=1 // pred_fallthru
      _
    // Predicated region
    $region30: #{tpu_custom_call.1} parent=1 // pred_check
      _
    $region31: #{tpu_custom_call.1} parent=1 // pred_check_branch
      %101 = sbr.rel (0) target = $region33
    $region32: #{tpu_custom_call.1} parent=1 // pred_region
      _
    $region33: #{tpu_custom_call.1} parent=1 // pred_fallthru
      _
    // Predicated region
    $region34: #{tpu_custom_call.1} parent=1 // pred_check
      _
    $region35: #{tpu_custom_call.1} parent=1 // pred_check_branch
      %103 = sbr.rel (0) target = $region37
    $region36: #{tpu_custom_call.1} parent=1 // pred_region
      %105 = vsyncadd [#allocation13], 0
      %s106 = sshll.u32 %s8, 4
      %s107 = int_to_ptr.hbm [resolvable:$true] %s106
      %s108 = sshll.u32 [#allocation14], 4
      %s109 = int_to_ptr.vmem [resolvable:$true] %s108
      %114 = dma.hbm_to_vmem [thread:$0]  %s107, 512, %s109, [#allocation13], 128, 128, 8
    $region37: #{tpu_custom_call.1} parent=1 // pred_fallthru
      _
    // Predicated region
    $region38: #{tpu_custom_call.1} parent=1 // pred_check
      _
    $region39: #{tpu_custom_call.1} parent=1 // pred_check_branch
      %116 = sbr.rel (0) target = $region41
    $region40: #{tpu_custom_call.1} parent=1 // pred_region
      _
    $region41: #{tpu_custom_call.1} parent=1 // pred_fallthru
      _
    // Predicated region
    $region42: #{tpu_custom_call.1} parent=1 // pred_check
      _
    $region43: #{tpu_custom_call.1} parent=1 // pred_check_branch
      %118 = sbr.rel (0) target = $region45
    $region44: #{tpu_custom_call.1} parent=1 // pred_region
      _
    $region45: #{tpu_custom_call.1} parent=1 // pred_fallthru
      _
    // Predicated region
    $region46: #{tpu_custom_call.1} parent=1 // pred_check
      _
    $region47: #{tpu_custom_call.1} parent=1 // pred_check_branch
      %120 = sbr.rel (0) target = $region49
    $region48: #{tpu_custom_call.1} parent=1 // pred_region
      _
    $region49: #{tpu_custom_call.1} parent=1 // pred_fallthru
      _
    // Predicated region
    $region50: #{tpu_custom_call.1} parent=1 // pred_check
      _
    $region51: #{tpu_custom_call.1} parent=1 // pred_check_branch
      %122 = sbr.rel (0) target = $region53
    $region52: #{tpu_custom_call.1} parent=1 // pred_region
      %124 = dma.done [#allocation4], 256
    $region53: #{tpu_custom_call.1} parent=1 // pred_fallthru
      _
    // Predicated region
    $region54: #{tpu_custom_call.1} parent=1 // pred_check
      _
    $region55: #{tpu_custom_call.1} parent=1 // pred_check_branch
      %126 = sbr.rel (0) target = $region57
    $region56: #{tpu_custom_call.1} parent=1 // pred_region
      %128 = dma.done [#allocation7], 64
    $region57: #{tpu_custom_call.1} parent=1 // pred_fallthru
      _
    // Predicated region
    $region58: #{tpu_custom_call.1} parent=1 // pred_check
      _
    $region59: #{tpu_custom_call.1} parent=1 // pred_check_branch
      %130 = sbr.rel (0) target = $region61
    $region60: #{tpu_custom_call.1} parent=1 // pred_region
      %132 = dma.done [#allocation7], 256
    $region61: #{tpu_custom_call.1} parent=1 // pred_fallthru
      _
    // Predicated region
    $region62: #{tpu_custom_call.1} parent=1 // pred_check
      _
    $region63: #{tpu_custom_call.1} parent=1 // pred_check_branch
      %134 = sbr.rel (0) target = $region65
    $region64: #{tpu_custom_call.1} parent=1 // pred_region
      %136 = dma.done [#allocation10], 512
    $region65: #{tpu_custom_call.1} parent=1 // pred_fallthru
      _
    // Predicated region
    $region66: #{tpu_custom_call.1} parent=1 // pred_check
      _
    $region67: #{tpu_custom_call.1} parent=1 // pred_check_branch
      %138 = sbr.rel (0) target = $region69
    $region68: #{tpu_custom_call.1} parent=1 // pred_region
      %140 = dma.done [#allocation10], 512
    $region69: #{tpu_custom_call.1} parent=1 // pred_fallthru
      _
    // Predicated region
    $region70: #{tpu_custom_call.1} parent=1 // pred_check
      _
    $region71: #{tpu_custom_call.1} parent=1 // pred_check_branch
      %142 = sbr.rel (0) target = $region73
    $region72: #{tpu_custom_call.1} parent=1 // pred_region
      %144 = dma.done [#allocation13], 128
    $region73: #{tpu_custom_call.1} parent=1 // pred_fallthru
      _
    // Predicated region
    $region74: #{tpu_custom_call.1} parent=1 // pred_check
      _
    $region75: #{tpu_custom_call.1} parent=1 // pred_check_branch
      %146 = sbr.rel (0) target = $region77
    $region76: #{tpu_custom_call.1} parent=1 // pred_region
      %148 = dma.done [#allocation13], 512
    $region77: #{tpu_custom_call.1} parent=1 // pred_fallthru
      _
    %v149 = vld [vmem:[#allocation3] sm:$0xff]
    %v150 = vld [vmem:[#allocation3 + $0x8] sm:$0xff]
    %v151 = vld [vmem:[#allocation8] sm:$0xff]
    %v152 = vld [vmem:[#allocation8 + $0x8] sm:$0xff]
    %v153 = vld [vmem:[%s4] sm:$0x1]
    %v155 = vperm.slane %v153, 0
    %vm157 = vcmask 130048
    %v159 = vsel %vm157, %v149, 0
    %v162 = vsel %vm157, %v150, 0
    %164 = vmatpush.msra.mxu0 0.0
    %165 = vmatpush.msra.mxu0 0.0
    %166 = vmatpush.msra.mxu0 0.0
    %167 = vmatpush.msra.mxu0 0.0
    %168 = vmatpush.msra.mxu0 0.0
    %169 = vmatpush.msra.mxu0 0.0
    %170 = vmatpush.msra.mxu0 0.0
    %171 = vmatpush.msra.mxu0 0.0
    %172 = vmatpush.msra.mxu0 0.0
    %173 = vmatpush.msra.mxu0 0.0
    %174 = vmatpush.msra.mxu0 0.0
    %175 = vmatpush.msra.mxu0 0.0
    %176 = vmatpush.msra.mxu0 0.0
    %177 = vmatpush.msra.mxu0 0.0
    %178 = vmatpush.msra.mxu0 %v152
    %179 = vmatpush.msra.mxu0 %v151
    %180 = vmatmul.f32.gmra.mxu0 %v159
    %v181 = vpop.f32.mrf.mxu0
    %v182 = vadd.f32 %v155, %v181
    %183 = vmatmul.f32.gmra.mxu0 %v162
    %v184 = vpop.f32.mrf.mxu0
    %v185 = vadd.f32 %v155, %v184
    %186 = vdwg.mxu0
    %v187 = vld [vmem:[#allocation9] sm:$0xff]
    %v188 = vld [vmem:[#allocation9 + $0x8] sm:$0xff]
    %v189 = vld [vmem:[#allocation9 + $0x10] sm:$0xff]
    %v190 = vld [vmem:[#allocation9 + $0x18] sm:$0xff]
    %vm191 = vcmask 261120
    %v193 = vsel %vm191, 0.0, 0
    %195 = vmatpush.msra.mxu0 0.0
    %196 = vmatpush.msra.mxu0 0.0
    %197 = vmatpush.msra.mxu0 0.0
    %198 = vmatpush.msra.mxu0 0.0
    %199 = vmatpush.msra.mxu0 0.0
    %200 = vmatpush.msra.mxu0 0.0
    %201 = vmatpush.msra.mxu0 0.0
    %202 = vmatpush.msra.mxu0 0.0
    %203 = vmatpush.msra.mxu0 0.0
    %204 = vmatpush.msra.mxu0 0.0
    %205 = vmatpush.msra.mxu0 0.0
    %206 = vmatpush.msra.mxu0 0.0
    %207 = vmatpush.msra.mxu0 %v190
    %208 = vmatpush.msra.mxu0 %v189
    %209 = vmatpush.msra.mxu0 %v188
    %210 = vmatpush.msra.mxu0 %v187
    %211 = vmatmul.f32.gmra.mxu0 %v193
    %v212 = vpop.f32.mrf.mxu0
    %v213 = vadd.f32 0.0, %v212
    %214 = vdwg.mxu0
    %v215 = vadd.f32 %v182, %v213
    %v216 = vxor.u32 %v215, 2147483648
    %v217 = vmul.f32 %v216, 1.442695
    %v218 = vpow.pop %v217
    %v219 = vadd.f32 %v218, 1.0
    %v220 = vrcp.pop %v219
    %v221 = vmul.f32 %v219, %v220
    %v222 = vsub.f32 1.0, %v221
    %v223 = vmul.f32 %v220, %v222
    %v224 = vadd.f32 %v220, %v223
    %vm225 = vweird.f32 %v219
    %vm226 = vweird.f32 %v220
    %vm227 = vmor %vm225, %vm226
    %v228 = vsel %vm227, %v220, %v224
    %v229 = vand.u32 2147483647, %v219
    %vm230 = vcmp.eq.f32.partialorder %v229, 8.507059e+37
    %v231 = vand.u32 %v219, 2147483648
    %v232 = vor.u32 1.1754944e-38, %v231
    %v233 = vsel %vm230, %v232, %v228
    %v234 = vmul.f32 1.0, %v233
    %v235 = vtanh.pop %v215
    %v236 = vmul.f32 %v234, 0.0
    %238 = vrot.lane.b32.xlu0 %v235, 64
    %v239 = vpop.permute.xlu0 %238
    %v241 = vmul.f32 %v234, %v239
    %243 = vrot.lane.b32.xlu0 %v241, 32
    %v244 = vpop.permute.xlu0 %243
    %v246 = vadd.f32 %v236, %v244
    %v247 = vtanh.pop %v246
    %249 = vrot.lane.b32.xlu0 %v247, 64
    %v250 = vpop.permute.xlu0 %249
    %v252 = vmul.f32 %v234, %v250
    %254 = vrot.lane.b32.xlu0 %v252, 32
    %v255 = vpop.permute.xlu0 %254
    %v256 = vsel %vm191, %v255, 0
    %258 = vmatpush.msra.mxu0 0.0
    %259 = vmatpush.msra.mxu0 0.0
    %260 = vmatpush.msra.mxu0 0.0
    %261 = vmatpush.msra.mxu0 0.0
    %262 = vmatpush.msra.mxu0 0.0
    %263 = vmatpush.msra.mxu0 0.0
    %264 = vmatpush.msra.mxu0 0.0
    %265 = vmatpush.msra.mxu0 0.0
    %266 = vmatpush.msra.mxu0 0.0
    %267 = vmatpush.msra.mxu0 0.0
    %268 = vmatpush.msra.mxu0 0.0
    %269 = vmatpush.msra.mxu0 0.0
    %270 = vmatpush.msra.mxu0 %v190
    %271 = vmatpush.msra.mxu0 %v189
    %272 = vmatpush.msra.mxu0 %v188
    %273 = vmatpush.msra.mxu0 %v187
    %274 = vmatmul.f32.gmra.mxu0 %v256
    %v275 = vpop.f32.mrf.mxu0
    %v276 = vadd.f32 0.0, %v275
    %277 = vdwg.mxu0
    %v279 = vrot.slane %v276, 6
    %v281 = vadd.f32 %v182, %v279
    %v282 = vxor.u32 %v281, 2147483648
    %v283 = vmul.f32 %v282, 1.442695
    %v284 = vpow.pop %v283
    %v285 = vadd.f32 %v284, 1.0
    %v286 = vrcp.pop %v285
    %v287 = vmul.f32 %v285, %v286
    %v288 = vsub.f32 1.0, %v287
    %v289 = vmul.f32 %v286, %v288
    %v290 = vadd.f32 %v286, %v289
    %vm291 = vweird.f32 %v285
    %vm292 = vweird.f32 %v286
    %vm293 = vmor %vm291, %vm292
    %v294 = vsel %vm293, %v286, %v290
    %v295 = vand.u32 2147483647, %v285
    %vm296 = vcmp.eq.f32.partialorder %v295, 8.507059e+37
    %v297 = vand.u32 %v285, 2147483648
    %v298 = vor.u32 1.1754944e-38, %v297
    %v299 = vsel %vm296, %v298, %v294
    %v300 = vmul.f32 1.0, %v299
    %v301 = vtanh.pop %v281
    %v303 = vrot.slane %v246, 6
    %v305 = vmul.f32 %v300, %v303
    %307 = vrot.lane.b32.xlu0 %v301, 64
    %v308 = vpop.permute.xlu0 %307
    %v310 = vmul.f32 %v300, %v308
    %312 = vrot.lane.b32.xlu0 %v310, 32
    %v313 = vpop.permute.xlu0 %312
    %v315 = vadd.f32 %v305, %v313
    %v316 = vtanh.pop %v315
    %318 = vrot.lane.b32.xlu0 %v316, 64
    %v319 = vpop.permute.xlu0 %318
    %v321 = vmul.f32 %v300, %v319
    %v323 = vrot.slane %v321, 2
    %324 = vrot.lane.b32.xlu0 %v323, 32
    %v325 = vpop.permute.xlu0 %324
    %v326 = vsel %vm191, %v325, 0
    %328 = vmatpush.msra.mxu0 0.0
    %329 = vmatpush.msra.mxu0 0.0
    %330 = vmatpush.msra.mxu0 0.0
    %331 = vmatpush.msra.mxu0 0.0
    %332 = vmatpush.msra.mxu0 0.0
    %333 = vmatpush.msra.mxu0 0.0
    %334 = vmatpush.msra.mxu0 0.0
    %335 = vmatpush.msra.mxu0 0.0
    %336 = vmatpush.msra.mxu0 0.0
    %337 = vmatpush.msra.mxu0 0.0
    %338 = vmatpush.msra.mxu0 0.0
    %339 = vmatpush.msra.mxu0 0.0
    %340 = vmatpush.msra.mxu0 %v190
    %341 = vmatpush.msra.mxu0 %v189
    %342 = vmatpush.msra.mxu0 %v188
    %343 = vmatpush.msra.mxu0 %v187
    %344 = vmatmul.f32.gmra.mxu0 %v326
    %v345 = vpop.f32.mrf.mxu0
    %v346 = vadd.f32 0.0, %v345
    %347 = vdwg.mxu0
    %v349 = vrot.slane %v346, 4
    %v351 = vadd.f32 %v182, %v349
    %v352 = vxor.u32 %v351, 2147483648
    %v353 = vmul.f32 %v352, 1.442695
    %v354 = vpow.pop %v353
    %v355 = vadd.f32 %v354, 1.0
    %v356 = vrcp.pop %v355
    %v357 = vmul.f32 %v355, %v356
    %v358 = vsub.f32 1.0, %v357
    %v359 = vmul.f32 %v356, %v358
    %v360 = vadd.f32 %v356, %v359
    %vm361 = vweird.f32 %v355
    %vm362 = vweird.f32 %v356
    %vm363 = vmor %vm361, %vm362
    %v364 = vsel %vm363, %v356, %v360
    %v365 = vand.u32 2147483647, %v355
    %vm366 = vcmp.eq.f32.partialorder %v365, 8.507059e+37
    %v367 = vand.u32 %v355, 2147483648
    %v368 = vor.u32 1.1754944e-38, %v367
    %v369 = vsel %vm366, %v368, %v364
    %v370 = vmul.f32 1.0, %v369
    %v371 = vtanh.pop %v351
    %v373 = vrot.slane %v315, 6
    %v375 = vmul.f32 %v370, %v373
    %377 = vrot.lane.b32.xlu0 %v371, 64
    %v378 = vpop.permute.xlu0 %377
    %v380 = vmul.f32 %v370, %v378
    %382 = vrot.lane.b32.xlu0 %v380, 32
    %v383 = vpop.permute.xlu0 %382
    %v385 = vadd.f32 %v375, %v383
    %v386 = vtanh.pop %v385
    %388 = vrot.lane.b32.xlu0 %v386, 64
    %v389 = vpop.permute.xlu0 %388
    %v391 = vmul.f32 %v370, %v389
    %v393 = vrot.slane %v391, 4
    %394 = vrot.lane.b32.xlu0 %v393, 32
    %v395 = vpop.permute.xlu0 %394
    %v396 = vsel %vm191, %v395, 0
    %398 = vmatpush.msra.mxu0 0.0
    %399 = vmatpush.msra.mxu0 0.0
    %400 = vmatpush.msra.mxu0 0.0
    %401 = vmatpush.msra.mxu0 0.0
    %402 = vmatpush.msra.mxu0 0.0
    %403 = vmatpush.msra.mxu0 0.0
    %404 = vmatpush.msra.mxu0 0.0
    %405 = vmatpush.msra.mxu0 0.0
    %406 = vmatpush.msra.mxu0 0.0
    %407 = vmatpush.msra.mxu0 0.0
    %408 = vmatpush.msra.mxu0 0.0
    %409 = vmatpush.msra.mxu0 0.0
    %410 = vmatpush.msra.mxu0 %v190
    %411 = vmatpush.msra.mxu0 %v189
    %412 = vmatpush.msra.mxu0 %v188
    %413 = vmatpush.msra.mxu0 %v187
    %414 = vmatmul.f32.gmra.mxu0 %v396
    %v415 = vpop.f32.mrf.mxu0
    %v416 = vadd.f32 0.0, %v415
    %417 = vdwg.mxu0
    %v419 = vrot.slane %v416, 2
    %v421 = vadd.f32 %v182, %v419
    %v422 = vxor.u32 %v421, 2147483648
    %v423 = vmul.f32 %v422, 1.442695
    %v424 = vpow.pop %v423
    %v425 = vadd.f32 %v424, 1.0
    %v426 = vrcp.pop %v425
    %v427 = vmul.f32 %v425, %v426
    %v428 = vsub.f32 1.0, %v427
    %v429 = vmul.f32 %v426, %v428
    %v430 = vadd.f32 %v426, %v429
    %vm431 = vweird.f32 %v425
    %vm432 = vweird.f32 %v426
    %vm433 = vmor %vm431, %vm432
    %v434 = vsel %vm433, %v426, %v430
    %v435 = vand.u32 2147483647, %v425
    %vm436 = vcmp.eq.f32.partialorder %v435, 8.507059e+37
    %v437 = vand.u32 %v425, 2147483648
    %v438 = vor.u32 1.1754944e-38, %v437
    %v439 = vsel %vm436, %v438, %v434
    %v440 = vmul.f32 1.0, %v439
    %v441 = vtanh.pop %v421
    %v443 = vrot.slane %v385, 6
    %v445 = vmul.f32 %v440, %v443
    %447 = vrot.lane.b32.xlu0 %v441, 64
    %v448 = vpop.permute.xlu0 %447
    %v450 = vmul.f32 %v440, %v448
    %452 = vrot.lane.b32.xlu0 %v450, 32
    %v453 = vpop.permute.xlu0 %452
    %v455 = vadd.f32 %v445, %v453
    %v456 = vtanh.pop %v455
    %458 = vrot.lane.b32.xlu0 %v456, 64
    %v459 = vpop.permute.xlu0 %458
    %v461 = vmul.f32 %v440, %v459
    %v463 = vrot.slane %v461, 6
    %464 = vrot.lane.b32.xlu0 %v463, 32
    %v465 = vpop.permute.xlu0 %464
    %v466 = vsel %vm191, %v465, 0
    %468 = vmatpush.msra.mxu0 0.0
    %469 = vmatpush.msra.mxu0 0.0
    %470 = vmatpush.msra.mxu0 0.0
    %471 = vmatpush.msra.mxu0 0.0
    %472 = vmatpush.msra.mxu0 0.0
    %473 = vmatpush.msra.mxu0 0.0
    %474 = vmatpush.msra.mxu0 0.0
    %475 = vmatpush.msra.mxu0 0.0
    %476 = vmatpush.msra.mxu0 0.0
    %477 = vmatpush.msra.mxu0 0.0
    %478 = vmatpush.msra.mxu0 0.0
    %479 = vmatpush.msra.mxu0 0.0
    %480 = vmatpush.msra.mxu0 %v190
    %481 = vmatpush.msra.mxu0 %v189
    %482 = vmatpush.msra.mxu0 %v188
    %483 = vmatpush.msra.mxu0 %v187
    %484 = vmatmul.f32.gmra.mxu0 %v466
    %v485 = vpop.f32.mrf.mxu0
    %v486 = vadd.f32 0.0, %v485
    %487 = vdwg.mxu0
    %v488 = vadd.f32 %v185, %v486
    %v489 = vxor.u32 %v488, 2147483648
    %v490 = vmul.f32 %v489, 1.442695
    %v491 = vpow.pop %v490
    %v492 = vadd.f32 %v491, 1.0
    %v493 = vrcp.pop %v492
    %v494 = vmul.f32 %v492, %v493
    %v495 = vsub.f32 1.0, %v494
    %v496 = vmul.f32 %v493, %v495
    %v497 = vadd.f32 %v493, %v496
    %vm498 = vweird.f32 %v492
    %vm499 = vweird.f32 %v493
    %vm500 = vmor %vm498, %vm499
    %v501 = vsel %vm500, %v493, %v497
    %v502 = vand.u32 2147483647, %v492
    %vm503 = vcmp.eq.f32.partialorder %v502, 8.507059e+37
    %v504 = vand.u32 %v492, 2147483648
    %v505 = vor.u32 1.1754944e-38, %v504
    %v506 = vsel %vm503, %v505, %v501
    %v507 = vmul.f32 1.0, %v506
    %v508 = vtanh.pop %v488
    %v510 = vrot.slane %v455, 6
    %v512 = vmul.f32 %v507, %v510
    %514 = vrot.lane.b32.xlu0 %v508, 64
    %v515 = vpop.permute.xlu0 %514
    %v517 = vmul.f32 %v507, %v515
    %519 = vrot.lane.b32.xlu0 %v517, 32
    %v520 = vpop.permute.xlu0 %519
    %v522 = vadd.f32 %v512, %v520
    %v523 = vtanh.pop %v522
    %525 = vrot.lane.b32.xlu0 %v523, 64
    %v526 = vpop.permute.xlu0 %525
    %v528 = vmul.f32 %v507, %v526
    %530 = vrot.lane.b32.xlu0 %v528, 32
    %v531 = vpop.permute.xlu0 %530
    %v532 = vsel %vm191, %v531, 0
    %534 = vmatpush.msra.mxu0 0.0
    %535 = vmatpush.msra.mxu0 0.0
    %536 = vmatpush.msra.mxu0 0.0
    %537 = vmatpush.msra.mxu0 0.0
    %538 = vmatpush.msra.mxu0 0.0
    %539 = vmatpush.msra.mxu0 0.0
    %540 = vmatpush.msra.mxu0 0.0
    %541 = vmatpush.msra.mxu0 0.0
    %542 = vmatpush.msra.mxu0 0.0
    %543 = vmatpush.msra.mxu0 0.0
    %544 = vmatpush.msra.mxu0 0.0
    %545 = vmatpush.msra.mxu0 0.0
    %546 = vmatpush.msra.mxu0 %v190
    %547 = vmatpush.msra.mxu0 %v189
    %548 = vmatpush.msra.mxu0 %v188
    %549 = vmatpush.msra.mxu0 %v187
    %550 = vmatmul.f32.gmra.mxu0 %v532
    %v551 = vpop.f32.mrf.mxu0
    %v552 = vadd.f32 0.0, %v551
    %553 = vdwg.mxu0
    %v555 = vrot.slane %v552, 6
    %v557 = vadd.f32 %v185, %v555
    %v558 = vxor.u32 %v557, 2147483648
    %v559 = vmul.f32 %v558, 1.442695
    %v560 = vpow.pop %v559
    %v561 = vadd.f32 %v560, 1.0
    %v562 = vrcp.pop %v561
    %v563 = vmul.f32 %v561, %v562
    %v564 = vsub.f32 1.0, %v563
    %v565 = vmul.f32 %v562, %v564
    %v566 = vadd.f32 %v562, %v565
    %vm567 = vweird.f32 %v561
    %vm568 = vweird.f32 %v562
    %vm569 = vmor %vm567, %vm568
    %v570 = vsel %vm569, %v562, %v566
    %v571 = vand.u32 2147483647, %v561
    %vm572 = vcmp.eq.f32.partialorder %v571, 8.507059e+37
    %v573 = vand.u32 %v561, 2147483648
    %v574 = vor.u32 1.1754944e-38, %v573
    %v575 = vsel %vm572, %v574, %v570
    %v576 = vmul.f32 1.0, %v575
    %v577 = vtanh.pop %v557
    %v579 = vrot.slane %v522, 6
    %v581 = vmul.f32 %v576, %v579
    %583 = vrot.lane.b32.xlu0 %v577, 64
    %v584 = vpop.permute.xlu0 %583
    %v586 = vmul.f32 %v576, %v584
    %588 = vrot.lane.b32.xlu0 %v586, 32
    %v589 = vpop.permute.xlu0 %588
    %v591 = vadd.f32 %v581, %v589
    %v592 = vtanh.pop %v591
    %594 = vrot.lane.b32.xlu0 %v592, 64
    %v595 = vpop.permute.xlu0 %594
    %v597 = vmul.f32 %v576, %v595
    %v599 = vrot.slane %v597, 2
    %600 = vrot.lane.b32.xlu0 %v599, 32
    %v601 = vpop.permute.xlu0 %600
    %v602 = vsel %vm191, %v601, 0
    %604 = vmatpush.msra.mxu0 0.0
    %605 = vmatpush.msra.mxu0 0.0
    %606 = vmatpush.msra.mxu0 0.0
    %607 = vmatpush.msra.mxu0 0.0
    %608 = vmatpush.msra.mxu0 0.0
    %609 = vmatpush.msra.mxu0 0.0
    %610 = vmatpush.msra.mxu0 0.0
    %611 = vmatpush.msra.mxu0 0.0
    %612 = vmatpush.msra.mxu0 0.0
    %613 = vmatpush.msra.mxu0 0.0
    %614 = vmatpush.msra.mxu0 0.0
    %615 = vmatpush.msra.mxu0 0.0
    %616 = vmatpush.msra.mxu0 %v190
    %617 = vmatpush.msra.mxu0 %v189
    %618 = vmatpush.msra.mxu0 %v188
    %619 = vmatpush.msra.mxu0 %v187
    %620 = vmatmul.f32.gmra.mxu0 %v602
    %v621 = vpop.f32.mrf.mxu0
    %v622 = vadd.f32 0.0, %v621
    %623 = vdwg.mxu0
    %v625 = vrot.slane %v622, 4
    %v627 = vadd.f32 %v185, %v625
    %v628 = vxor.u32 %v627, 2147483648
    %v629 = vmul.f32 %v628, 1.442695
    %v630 = vpow.pop %v629
    %v631 = vadd.f32 %v630, 1.0
    %v632 = vrcp.pop %v631
    %v633 = vmul.f32 %v631, %v632
    %v634 = vsub.f32 1.0, %v633
    %v635 = vmul.f32 %v632, %v634
    %v636 = vadd.f32 %v632, %v635
    %vm637 = vweird.f32 %v631
    %vm638 = vweird.f32 %v632
    %vm639 = vmor %vm637, %vm638
    %v640 = vsel %vm639, %v632, %v636
    %v641 = vand.u32 2147483647, %v631
    %vm642 = vcmp.eq.f32.partialorder %v641, 8.507059e+37
    %v643 = vand.u32 %v631, 2147483648
    %v644 = vor.u32 1.1754944e-38, %v643
    %v645 = vsel %vm642, %v644, %v640
    %v646 = vmul.f32 1.0, %v645
    %v647 = vtanh.pop %v627
    %v649 = vrot.slane %v591, 6
    %v651 = vmul.f32 %v646, %v649
    %653 = vrot.lane.b32.xlu0 %v647, 64
    %v654 = vpop.permute.xlu0 %653
    %v656 = vmul.f32 %v646, %v654
    %658 = vrot.lane.b32.xlu0 %v656, 32
    %v659 = vpop.permute.xlu0 %658
    %v661 = vadd.f32 %v651, %v659
    %v662 = vtanh.pop %v661
    %664 = vrot.lane.b32.xlu0 %v662, 64
    %v665 = vpop.permute.xlu0 %664
    %v667 = vmul.f32 %v646, %v665
    %v669 = vrot.slane %v667, 4
    %670 = vrot.lane.b32.xlu0 %v669, 32
    %v671 = vpop.permute.xlu0 %670
    %v672 = vsel %vm191, %v671, 0
    %674 = vmatpush.msra.mxu0 0.0
    %675 = vmatpush.msra.mxu0 0.0
    %676 = vmatpush.msra.mxu0 0.0
    %677 = vmatpush.msra.mxu0 0.0
    %678 = vmatpush.msra.mxu0 0.0
    %679 = vmatpush.msra.mxu0 0.0
    %680 = vmatpush.msra.mxu0 0.0
    %681 = vmatpush.msra.mxu0 0.0
    %682 = vmatpush.msra.mxu0 0.0
    %683 = vmatpush.msra.mxu0 0.0
    %684 = vmatpush.msra.mxu0 0.0
    %685 = vmatpush.msra.mxu0 0.0
    %686 = vmatpush.msra.mxu0 %v190
    %687 = vmatpush.msra.mxu0 %v189
    %688 = vmatpush.msra.mxu0 %v188
    %689 = vmatpush.msra.mxu0 %v187
    %690 = vmatmul.f32.gmra.mxu0 %v672
    %v691 = vpop.f32.mrf.mxu0
    %v692 = vadd.f32 0.0, %v691
    %693 = vdwg.mxu0
    %v695 = vrot.slane %v692, 2
    %v697 = vadd.f32 %v185, %v695
    %v698 = vxor.u32 %v697, 2147483648
    %v699 = vmul.f32 %v698, 1.442695
    %v700 = vpow.pop %v699
    %v701 = vadd.f32 %v700, 1.0
    %v702 = vrcp.pop %v701
    %v703 = vmul.f32 %v701, %v702
    %v704 = vsub.f32 1.0, %v703
    %v705 = vmul.f32 %v702, %v704
    %v706 = vadd.f32 %v702, %v705
    %vm707 = vweird.f32 %v701
    %vm708 = vweird.f32 %v702
    %vm709 = vmor %vm707, %vm708
    %v710 = vsel %vm709, %v702, %v706
    %v711 = vand.u32 2147483647, %v701
    %vm712 = vcmp.eq.f32.partialorder %v711, 8.507059e+37
    %v713 = vand.u32 %v701, 2147483648
    %v714 = vor.u32 1.1754944e-38, %v713
    %v715 = vsel %vm712, %v714, %v710
    %v716 = vmul.f32 1.0, %v715
    %v717 = vtanh.pop %v697
    %v719 = vrot.slane %v661, 6
    %v721 = vmul.f32 %v716, %v719
    %723 = vrot.lane.b32.xlu0 %v717, 64
    %v724 = vpop.permute.xlu0 %723
    %v726 = vmul.f32 %v716, %v724
    %728 = vrot.lane.b32.xlu0 %v726, 32
    %v729 = vpop.permute.xlu0 %728
    %v731 = vadd.f32 %v721, %v729
    %v732 = vtanh.pop %v731
    %734 = vrot.lane.b32.xlu0 %v732, 64
    %v735 = vpop.permute.xlu0 %734
    %v737 = vmul.f32 %v716, %v735
    %v738 = vld [vmem:[#allocation11] sm:$0xff]
    %v739 = vld [vmem:[#allocation11 + $0x8] sm:$0xff]
    %v740 = vld [vmem:[#allocation11 + $0x10] sm:$0xff]
    %v741 = vld [vmem:[#allocation11 + $0x18] sm:$0xff]
    %v743 = vrot.slane %v737, 7
    %744 = vrot.lane.b32.xlu0 %v743, 32
    %v745 = vpop.permute.xlu0 %744
    %v746 = vsel %vm191, %v745, 0
    %748 = vmatpush.msra.mxu0 0.0
    %749 = vmatpush.msra.mxu0 0.0
    %750 = vmatpush.msra.mxu0 0.0
    %751 = vmatpush.msra.mxu0 0.0
    %752 = vmatpush.msra.mxu0 0.0
    %753 = vmatpush.msra.mxu0 0.0
    %754 = vmatpush.msra.mxu0 0.0
    %755 = vmatpush.msra.mxu0 0.0
    %756 = vmatpush.msra.mxu0 0.0
    %757 = vmatpush.msra.mxu0 0.0
    %758 = vmatpush.msra.mxu0 0.0
    %759 = vmatpush.msra.mxu0 0.0
    %760 = vmatpush.msra.mxu0 %v741
    %761 = vmatpush.msra.mxu0 %v740
    %762 = vmatpush.msra.mxu0 %v739
    %763 = vmatpush.msra.mxu0 %v738
    %764 = vmatmul.f32.gmra.mxu0 %v746
    %v765 = vpop.f32.mrf.mxu0
    %v766 = vadd.f32 0.0, %v765
    %767 = vdwg.mxu0
    %v768 = vld [vmem:[#allocation6] sm:$0xf]
    %v769 = vld [vmem:[#allocation12] sm:$0xff]
    %v770 = vperm.slane %v766, 0
    %vm771 = vcmask 64512
    %v773 = vsel %vm771, %v768, 0
    %775 = vmatpush.msra.mxu0 0.0
    %776 = vmatpush.msra.mxu0 0.0
    %777 = vmatpush.msra.mxu0 0.0
    %778 = vmatpush.msra.mxu0 0.0
    %779 = vmatpush.msra.mxu0 0.0
    %780 = vmatpush.msra.mxu0 0.0
    %781 = vmatpush.msra.mxu0 0.0
    %782 = vmatpush.msra.mxu0 0.0
    %783 = vmatpush.msra.mxu0 0.0
    %784 = vmatpush.msra.mxu0 0.0
    %785 = vmatpush.msra.mxu0 0.0
    %786 = vmatpush.msra.mxu0 0.0
    %787 = vmatpush.msra.mxu0 0.0
    %788 = vmatpush.msra.mxu0 0.0
    %789 = vmatpush.msra.mxu0 0.0
    %790 = vmatpush.msra.mxu0 %v769
    %791 = vmatmul.f32.gmra.mxu0 %v773
    %v792 = vpop.f32.mrf.mxu0
    %v793 = vadd.f32 %v770, %v792
    %794 = vdwg.mxu0
    %v795 = vld [vmem:[%s7] sm:$0x1]
    %v797 = vperm.slane %v795, 0
    %v799 = vadd.f32 %v793, %v797
    %vm800 = vcmp.gt.f32.partialorder %v799, 0.0
    %v801 = vmul.f32 %v799, 0.01
    %v802 = vsel %vm800, %v799, %v801
    %v803 = vld [vmem:[#allocation14] sm:$0xff]
    %v804 = vld [vmem:[#allocation14 + $0x8] sm:$0xff]
    %v805 = vld [vmem:[#allocation14 + $0x10] sm:$0xff]
    %v806 = vld [vmem:[#allocation14 + $0x18] sm:$0xff]
    %v807 = vld [vmem:[%s9] sm:$0x1]
    %v809 = vperm.slane %v807, 0
    %v812 = vsel %vm191, %v802, 0
    %814 = vmatpush.msra.mxu0 0.0
    %815 = vmatpush.msra.mxu0 0.0
    %816 = vmatpush.msra.mxu0 0.0
    %817 = vmatpush.msra.mxu0 0.0
    %818 = vmatpush.msra.mxu0 0.0
    %819 = vmatpush.msra.mxu0 0.0
    %820 = vmatpush.msra.mxu0 0.0
    %821 = vmatpush.msra.mxu0 0.0
    %822 = vmatpush.msra.mxu0 0.0
    %823 = vmatpush.msra.mxu0 0.0
    %824 = vmatpush.msra.mxu0 0.0
    %825 = vmatpush.msra.mxu0 0.0
    %826 = vmatpush.msra.mxu0 %v806
    %827 = vmatpush.msra.mxu0 %v805
    %828 = vmatpush.msra.mxu0 %v804
    %829 = vmatpush.msra.mxu0 %v803
    %830 = vmatmul.f32.gmra.mxu0 %v812
    %v831 = vpop.f32.mrf.mxu0
    %v832 = vadd.f32 %v809, %v831
    %833 = vdwg.mxu0
    %vm834 = vcmp.gt.f32.partialorder %v832, 0.0
    %v835 = vmul.f32 %v832, 0.01
    %v836 = vsel %vm834, %v832, %v835
    %v837 = vld [vmem:[%s10] sm:$0x1]
    %v838 = vld [vmem:[#allocation2] sm:$0x1]
    %840 = vset.pattern.permute.xlu0 0
    %841 = vperm.xlu0 %840, %v838
    %v842 = vpop.permute.xlu0 %841
    %v844 = vperm.slane %v842, 0
    %v846 = vsel %vm191, %v837, 0
    %v849 = vsel %vm191, %v836, 0
    %851 = vmatpush.xpose.msra.mxu0 0.0
    %852 = vmatpush.xpose.msra.mxu0 0.0
    %853 = vmatpush.xpose.msra.mxu0 0.0
    %854 = vmatpush.xpose.msra.mxu0 0.0
    %855 = vmatpush.xpose.msra.mxu0 0.0
    %856 = vmatpush.xpose.msra.mxu0 0.0
    %857 = vmatpush.xpose.msra.mxu0 0.0
    %858 = vmatpush.xpose.msra.mxu0 0.0
    %859 = vmatpush.xpose.msra.mxu0 0.0
    %860 = vmatpush.xpose.msra.mxu0 0.0
    %861 = vmatpush.xpose.msra.mxu0 0.0
    %862 = vmatpush.xpose.msra.mxu0 0.0
    %863 = vmatpush.xpose.msra.mxu0 0.0
    %864 = vmatpush.xpose.msra.mxu0 0.0
    %865 = vmatpush.xpose.msra.mxu0 0.0
    %866 = vmatpush.xpose.msra.mxu0 %v849
    %867 = vmatmul.f32.gmra.mxu0 %v846
    %v868 = vpop.f32.mrf.mxu0
    %v869 = vadd.f32 %v844, %v868
    %870 = vdwg.mxu0
    %v871 = vtanh.pop %v869
    %vm872 = vcmask 24576
    %873 = vst.msk [vmem:[#allocation15] sm:$0x1] %vm872, %v871
    // Predicated region
    $region78: #{tpu_custom_call.1} parent=1 // pred_check
      _
    $region79: #{tpu_custom_call.1} parent=1 // pred_check_branch
      %875 = sbr.rel (0) target = $region81
    $region80: #{tpu_custom_call.1} parent=1 // pred_region
      %877 = vsyncadd [#allocation5], 0
      %s879 = sshll.u32 [#allocation15], 4
      %s880 = int_to_ptr.vmem [resolvable:$true] %s879
      %s881 = sshll.u32 %s12, 4
      %s882 = int_to_ptr.hbm [resolvable:$true] %s881
      %884 = dma.vmem_to_hbm [thread:$0]  %s880, 16, %s882, [#allocation5]
    $region81: #{tpu_custom_call.1} parent=1 // pred_fallthru
      _
    // Predicated region
    $region82: #{tpu_custom_call.1} parent=1 // pred_check
      _
    $region83: #{tpu_custom_call.1} parent=1 // pred_check_branch
      %886 = sbr.rel (0) target = $region85
    $region84: #{tpu_custom_call.1} parent=1 // pred_region
      %888 = dma.done [#allocation5], 16
    $region85: #{tpu_custom_call.1} parent=1 // pred_fallthru
      _
    %889 = vsyncpa [#allocation4], 1
    %890 = vsyncpa [#allocation7], 1
    %891 = vsyncpa [#allocation10], 1
    %892 = vsyncpa [#allocation13], 1
    %893 = vsyncpa [#allocation5], 1

</llo_original>
